<compile_context>
chip_gen: v7x
topology: tpu7x:2x2x1
jax: 0.10.0
libtpu: 0.0.40
codegen_flags: <defaults>
</compile_context>

<pallas_src>
import functools

import jax
import jax.numpy as jnp
from jax import lax
from jax.experimental import pallas as pl
from jax.experimental.pallas import tpu as pltpu


def _round_up(x, m):
    return ((x + m - 1) // m) * m


def _focal_from_stats(x_t, a_t, m, denom, gamma):
    """Final per-row focal loss from softmax statistics. All args (T, 1) f32."""
    shifted = x_t - m
    log_p = shifted - jnp.log(denom)          # log-softmax gathered at target
    e_t = jnp.exp(shifted)
    # NOTE: (denom - e_t)/denom loses relative precision as p -> 1, but the
    # loss -> 0 there, so the absolute error is benign (per review).
    one_minus_p = (denom - e_t) / denom
    if float(gamma).is_integer():
        focal_w = lax.integer_pow(one_minus_p, int(gamma))
    else:
        focal_w = jnp.exp(jnp.float32(gamma) *
                          jnp.log(jnp.maximum(one_minus_p, jnp.float32(1e-30))))
    return -a_t * focal_w * log_p


def _focal_kernel(x_ref, xt_ref, at_ref, out_ref, m_ref, d_ref, *, gamma, emit_sum):
    """Row-tiled, class-tiled focal loss with online softmax statistics.

    grid = (row_tiles [parallel], class_tiles [arbitrary]).
    Scratch: m_ref/d_ref are the running max and rescaled sum(exp), (T, 1) f32.
    """
    j = pl.program_id(1)

    @pl.when(j == 0)
    def _init():
        m_ref[...] = jnp.full(m_ref.shape, -jnp.inf, m_ref.dtype)
        d_ref[...] = jnp.zeros(d_ref.shape, d_ref.dtype)

    # Online accumulation over this class block (only 2 cross-lane reductions).
    x = x_ref[...].astype(jnp.float32)                            # (T, Ct)
    m_prev = m_ref[...]
    m_new = jnp.maximum(m_prev, jnp.max(x, axis=1, keepdims=True))
    d_ref[...] = (d_ref[...] * jnp.exp(m_prev - m_new)
                  + jnp.sum(jnp.exp(x - m_new), axis=1, keepdims=True))
    m_ref[...] = m_new

    @pl.when(j == pl.num_programs(1) - 1)
    def _finish():
        loss = _focal_from_stats(xt_ref[...], at_ref[...],
                                 m_ref[...], d_ref[...], gamma)    # (T, 1)
        if emit_sum:
            # One partial sum per row tile, broadcast into a layout-legal
            # (1, 8, 128) tile (unmasked lane-dense store); wrapper reads [i,0,0].
            out_ref[...] = jnp.full(out_ref.shape, jnp.sum(loss), out_ref.dtype)
        else:
            out_ref[...] = loss


def focal_loss(inputs, targets, alpha=None, *, gamma=2.0, size_average=True,
               reduce=True):
    """JAX/Pallas equivalent of FocalLoss.forward (softmax branch)."""
    inputs = jnp.asarray(inputs)
    targets = jnp.asarray(targets)
    n, c = inputs.shape
    t = targets.reshape(-1).astype(jnp.int32)

    if alpha is None:
        alpha_vec = jnp.ones((c,), jnp.float32)
    else:
        alpha_vec = jnp.asarray(alpha, jnp.float32).reshape(-1)

    # Per-row gathers hoisted out of the kernel (tiny XLA gathers): removes the
    # (T, C) one-hot select and a third full-width reduction from the kernel.
    a_col = jnp.take(alpha_vec, t).reshape(n, 1).astype(jnp.float32)
    xt_col = jnp.take_along_axis(inputs, t[:, None], axis=1).astype(jnp.float32)

    # ---- Tile sizing by an explicit VMEM byte budget -----------------------
    # unit = bytes/logit-element of live VMEM: 2 pipeline buffers of the input
    # dtype + ~3 f32 intermediates (x_f32, exp(x-m), temp) that the block math
    # materializes.  64 B/row covers the (T,1) columns and scratch.
    itemsize = jnp.dtype(inputs.dtype).itemsize
    unit = 2 * itemsize + 12
    budget = 10 * 1024 * 1024      # <= v5e 16 MiB default scoped; << v7x 32 MiB

    # Class axis: keep it whole when a 128-row tile fits the budget; otherwise
    # tile it in multiples of 128 (online softmax handles the split exactly).
    if 128 * (c * unit + 64) <= budget:
        tile_c, c_pad = c, c
    else:
        tile_c = max(128, (budget // (128 * unit)) // 128 * 128)
        c_pad = _round_up(c, tile_c)

    n_128 = _round_up(n, 128)
    tile_n = budget // (tile_c * unit + 64)
    tile_n = min(tile_n, 8192, n_128)
    if n_128 >= 256:
        # Keep >= 2 row tiles so v7x's two TensorCores both get work.
        tile_n = min(tile_n, _round_up((n + 1) // 2, 128))
    tile_n = max(128, (tile_n // 128) * 128)
    n_pad = _round_up(n, tile_n)
    num_row_tiles = n_pad // tile_n
    num_col_tiles = c_pad // tile_c

    x = inputs
    if c_pad > c:   # pad classes with -inf -> exp() contributes exactly 0
        x = jnp.pad(x, ((0, 0), (0, c_pad - c)), constant_values=-jnp.inf)
    if n_pad > n:   # pad rows with finite logits and alpha=0 -> exactly 0 loss
        x = jnp.pad(x, ((0, n_pad - n), (0, 0)))
        xt_col = jnp.pad(xt_col, ((0, n_pad - n), (0, 0)))
        a_col = jnp.pad(a_col, ((0, n_pad - n), (0, 0)))

    in_specs = [
        pl.BlockSpec((tile_n, tile_c), lambda i, j: (i, j)),   # logits tile
        pl.BlockSpec((tile_n, 1), lambda i, j: (i, 0)),        # target logit
        pl.BlockSpec((tile_n, 1), lambda i, j: (i, 0)),        # alpha[target]
    ]
    scratch = [pltpu.VMEM((tile_n, 1), jnp.float32),           # running max
               pltpu.VMEM((tile_n, 1), jnp.float32)]           # running sum(exp)
    cparams = pltpu.CompilerParams(
        dimension_semantics=("parallel", "arbitrary"),
        vmem_limit_bytes=32 * 1024 * 1024)

    if reduce:
        # Common path: per-tile partial sums only (no per-sample writeback);
        # the mean/sum is finished in XLA.
        psums = pl.pallas_call(
            functools.partial(_focal_kernel, gamma=gamma, emit_sum=True),
            out_shape=jax.ShapeDtypeStruct((num_row_tiles, 8, 128), jnp.float32),
            grid=(num_row_tiles, num_col_tiles),
            in_specs=in_specs,
            out_specs=pl.BlockSpec((1, 8, 128), lambda i, j: (i, 0, 0)),
            scratch_shapes=scratch,
            compiler_params=cparams,
        )(x, xt_col, a_col)
        total = jnp.sum(psums[:, 0, 0])
        return total / n if size_average else total

    # reduce=False: per-sample (N, 1) losses, as in the PyTorch module.
    batch_loss = pl.pallas_call(
        functools.partial(_focal_kernel, gamma=gamma, emit_sum=False),
        out_shape=jax.ShapeDtypeStruct((n_pad, 1), jnp.float32),
        grid=(num_row_tiles, num_col_tiles),
        in_specs=in_specs,
        out_specs=pl.BlockSpec((tile_n, 1), lambda i, j: (i, 0)),
        scratch_shapes=scratch,
        compiler_params=cparams,
    )(x, xt_col, a_col)
    return batch_loss[:n]


if __name__ == "__main__":
    key = jax.random.PRNGKey(0)
    k_x, k_t = jax.random.split(key)

    N, CLASS_NUM = 8, 4
    inputs = jax.random.normal(k_x, (N, CLASS_NUM), dtype=jnp.float32)
    targets = jax.random.randint(k_t, (N,), 0, CLASS_NUM, dtype=jnp.int32)
    alpha = jnp.ones((CLASS_NUM, 1), dtype=jnp.float32)   # module default alpha

    mean_loss = focal_loss(inputs, targets, alpha, gamma=2.0,
                           size_average=True, reduce=True)
    sum_loss = focal_loss(inputs, targets, alpha, gamma=2.0,
                          size_average=False, reduce=True)
    batch_loss = focal_loss(inputs, targets, alpha, gamma=2.0, reduce=False)
    jax.block_until_ready((mean_loss, sum_loss, batch_loss))

    # Plain-JAX reference (same math as the PyTorch module, softmax branch).
    p_full = jax.nn.softmax(inputs, axis=1)
    p_t = p_full[jnp.arange(N), targets][:, None]
    a_t = alpha[targets, 0][:, None]
    ref_batch = -a_t * (1.0 - p_t) ** 2 * jnp.log(p_t)

    assert jnp.allclose(mean_loss, jnp.mean(ref_batch), rtol=1e-4, atol=1e-6), \
        (mean_loss, jnp.mean(ref_batch))
    assert jnp.allclose(sum_loss, jnp.sum(ref_batch), rtol=1e-4, atol=1e-6), \
        (sum_loss, jnp.sum(ref_batch))
    assert jnp.allclose(batch_loss, ref_batch, rtol=1e-4, atol=1e-6), \
        (batch_loss, ref_batch)

    print("KERNEL_OK")
</pallas_src>

<mosaic_0001>
module attributes {stable_mosaic.version = 11 : i64} {
  func.func @_focal_kernel(%arg0: i32, %arg1: i32, %arg2: memref<128x4xf32, #tpu.memory_space<vmem>>, %arg3: memref<128x1xf32, #tpu.memory_space<vmem>>, %arg4: memref<128x1xf32, #tpu.memory_space<vmem>>, %arg5: memref<1x8x128xf32, #tpu.memory_space<vmem>>, %arg6: memref<128x1xf32, #tpu.memory_space<vmem>>, %arg7: memref<128x1xf32, #tpu.memory_space<vmem>>) attributes {dimension_semantics = [#tpu.dimension_semantics<parallel>, #tpu.dimension_semantics<arbitrary>], iteration_bounds = array<i64: 1, 1>, scalar_prefetch = 0 : i64, scratch_operands = 2 : i64, tpu.core_type = #tpu.core_type<tc>, window_params = [{transform_indices = @transform_0, window_bounds = array<i64: 128, 4>}, {transform_indices = @transform_1, window_bounds = array<i64: 128, 1>}, {transform_indices = @transform_2, window_bounds = array<i64: 128, 1>}, {transform_indices = @transform_3, window_bounds = array<i64: 1, 8, 128>}]} {
    %c0_i32 = arith.constant 0 : i32
    %0 = arith.cmpi eq, %arg1, %c0_i32 : i32
    %1 = arith.extui %0 : i1 to i32
    %c0_i32_0 = arith.constant 0 : i32
    %2 = arith.cmpi ne, %1, %c0_i32_0 : i32
    scf.if %2 {
      %cst_13 = arith.constant 0xFF800000 : f32
      %23 = vector.broadcast %cst_13 : f32 to vector<128x1xf32>
      %c0_14 = arith.constant 0 : index
      %c0_15 = arith.constant 0 : index
      %24 = vector.load %arg6[%c0_14, %c0_15] : memref<128x1xf32, #tpu.memory_space<vmem>>, vector<128x1xf32>
      tpu.vector_store %arg6[%c0_14, %c0_15], %23 {strides = array<i32>} : memref<128x1xf32, #tpu.memory_space<vmem>>, vector<128x1xf32>,
      %cst_16 = arith.constant 0.000000e+00 : f32
      %25 = vector.broadcast %cst_16 : f32 to vector<128x1xf32>
      %c0_17 = arith.constant 0 : index
      %c0_18 = arith.constant 0 : index
      %26 = vector.load %arg7[%c0_17, %c0_18] : memref<128x1xf32, #tpu.memory_space<vmem>>, vector<128x1xf32>
      tpu.vector_store %arg7[%c0_17, %c0_18], %25 {strides = array<i32>} : memref<128x1xf32, #tpu.memory_space<vmem>>, vector<128x1xf32>,
    } else {
    }
    %c0 = arith.constant 0 : index
    %c0_1 = arith.constant 0 : index
    %3 = vector.load %arg2[%c0, %c0_1] : memref<128x4xf32, #tpu.memory_space<vmem>>, vector<128x4xf32>
    %c0_2 = arith.constant 0 : index
    %c0_3 = arith.constant 0 : index
    %4 = vector.load %arg6[%c0_2, %c0_3] : memref<128x1xf32, #tpu.memory_space<vmem>>, vector<128x1xf32>
    %cst = arith.constant dense<0xFF800000> : vector<128xf32>
    %5 = vector.multi_reduction <maximumf>, %3, %cst [1] : vector<128x4xf32> to vector<128xf32>
    %6 = vector.shape_cast %5 : vector<128xf32> to vector<128x1xf32>
    %7 = arith.maximumf %4, %6 : vector<128x1xf32>
    %c0_4 = arith.constant 0 : index
    %c0_5 = arith.constant 0 : index
    %8 = vector.load %arg7[%c0_4, %c0_5] : memref<128x1xf32, #tpu.memory_space<vmem>>, vector<128x1xf32>
    %9 = arith.subf %4, %7 : vector<128x1xf32>
    %10 = math.exp %9 : vector<128x1xf32>
    %11 = arith.mulf %8, %10 : vector<128x1xf32>
    %12 = vector.broadcast %7 : vector<128x1xf32> to vector<128x4xf32>
    %13 = arith.subf %3, %12 : vector<128x4xf32>
    %14 = math.exp %13 : vector<128x4xf32>
    %cst_6 = arith.constant dense<0.000000e+00> : vector<128xf32>
    %15 = vector.multi_reduction <add>, %14, %cst_6 [1] : vector<128x4xf32> to vector<128xf32>
    %16 = vector.shape_cast %15 : vector<128xf32> to vector<128x1xf32>
    %17 = arith.addf %11, %16 : vector<128x1xf32>
    %c0_7 = arith.constant 0 : index
    %c0_8 = arith.constant 0 : index
    %18 = vector.load %arg7[%c0_7, %c0_8] : memref<128x1xf32, #tpu.memory_space<vmem>>, vector<128x1xf32>
    tpu.vector_store %arg7[%c0_7, %c0_8], %17 {strides = array<i32>} : memref<128x1xf32, #tpu.memory_space<vmem>>, vector<128x1xf32>,
    %c0_9 = arith.constant 0 : index
    %c0_10 = arith.constant 0 : index
    %19 = vector.load %arg6[%c0_9, %c0_10] : memref<128x1xf32, #tpu.memory_space<vmem>>, vector<128x1xf32>
    tpu.vector_store %arg6[%c0_9, %c0_10], %7 {strides = array<i32>} : memref<128x1xf32, #tpu.memory_space<vmem>>, vector<128x1xf32>,
    %c0_i32_11 = arith.constant 0 : i32
    %20 = arith.cmpi eq, %arg1, %c0_i32_11 : i32
    %21 = arith.extui %20 : i1 to i32
    %c0_i32_12 = arith.constant 0 : i32
    %22 = arith.cmpi ne, %21, %c0_i32_12 : i32
    scf.if %22 {
      %c0_13 = arith.constant 0 : index
      %c0_14 = arith.constant 0 : index
      %23 = vector.load %arg3[%c0_13, %c0_14] : memref<128x1xf32, #tpu.memory_space<vmem>>, vector<128x1xf32>
      %c0_15 = arith.constant 0 : index
      %c0_16 = arith.constant 0 : index
      %24 = vector.load %arg4[%c0_15, %c0_16] : memref<128x1xf32, #tpu.memory_space<vmem>>, vector<128x1xf32>
      %c0_17 = arith.constant 0 : index
      %c0_18 = arith.constant 0 : index
      %25 = vector.load %arg6[%c0_17, %c0_18] : memref<128x1xf32, #tpu.memory_space<vmem>>, vector<128x1xf32>
      %c0_19 = arith.constant 0 : index
      %c0_20 = arith.constant 0 : index
      %26 = vector.load %arg7[%c0_19, %c0_20] : memref<128x1xf32, #tpu.memory_space<vmem>>, vector<128x1xf32>
      %27 = arith.subf %23, %25 : vector<128x1xf32>
      %28 = math.log %26 : vector<128x1xf32>
      %29 = arith.subf %27, %28 : vector<128x1xf32>
      %30 = math.exp %27 : vector<128x1xf32>
      %31 = arith.subf %26, %30 : vector<128x1xf32>
      %32 = arith.divf %31, %26 : vector<128x1xf32>
      %33 = arith.mulf %32, %32 : vector<128x1xf32>
      %cst_21 = arith.constant 0.000000e+00 : f32
      %34 = vector.broadcast %cst_21 : f32 to vector<128x1xf32>
      %35 = arith.subf %34, %24 : vector<128x1xf32>
      %36 = arith.mulf %35, %33 : vector<128x1xf32>
      %37 = arith.mulf %36, %29 : vector<128x1xf32>
      %38 = vector.shape_cast %37 : vector<128x1xf32> to vector<1x128x1xf32>
      %cst_22 = arith.constant dense<0.000000e+00> : vector<1xf32>
      %39 = vector.multi_reduction <add>, %38, %cst_22 [1, 2] : vector<1x128x1xf32> to vector<1xf32>
      %40 = vector.shape_cast %39 : vector<1xf32> to vector<1x1x1xf32>
      %41 = vector.extract %40[0, 0, 0] : f32 from vector<1x1x1xf32>
      %42 = vector.broadcast %41 : f32 to vector<1x8x128xf32>
      %c0_23 = arith.constant 0 : index
      %c0_24 = arith.constant 0 : index
      %c0_25 = arith.constant 0 : index
      %43 = vector.load %arg5[%c0_23, %c0_24, %c0_25] : memref<1x8x128xf32, #tpu.memory_space<vmem>>, vector<1x8x128xf32>
      tpu.vector_store %arg5[%c0_23, %c0_24, %c0_25], %42 {strides = array<i32>} : memref<1x8x128xf32, #tpu.memory_space<vmem>>, vector<1x8x128xf32>,
    } else {
    }
    return
  }
  func.func @transform_0(%arg0: i32, %arg1: i32) -> (i32, i32) {
    %c0_i32 = arith.constant 0 : i32
    return %arg0, %arg1 : i32, i32
  }
  func.func @transform_1(%arg0: i32, %arg1: i32) -> (i32, i32) {
    %c0_i32 = arith.constant 0 : i32
    %c0_i32_0 = arith.constant 0 : i32
    return %arg0, %c0_i32 : i32, i32
  }
  func.func @transform_2(%arg0: i32, %arg1: i32) -> (i32, i32) {
    %c0_i32 = arith.constant 0 : i32
    %c0_i32_0 = arith.constant 0 : i32
    return %arg0, %c0_i32 : i32, i32
  }
  func.func @transform_3(%arg0: i32, %arg1: i32) -> (i32, i32, i32) {
    %c0_i32 = arith.constant 0 : i32
    %c0_i32_0 = arith.constant 0 : i32
    %c0_i32_1 = arith.constant 0 : i32
    return %arg0, %c0_i32, %c0_i32_0 : i32, i32, i32
  }
}

</mosaic_0001>

<llo_original>
// kernel: tpu_custom_call.1
$region0: #{tpu_custom_call.1}
  #allocation0 [shape = 'u32[]', space=smem, size = 0x4, offset = 0x4, fixed_abs, tag = 'smem constant byte address 0x4 - core index']
  #allocation1 [shape = 'u32[144,128]{1,0:T(1,128)}', space=vmem, size = 0x12000, scoped, tag = 'internal scratch']
  #allocation2 [shape = 'f32[128,1]{1,0:T(8,128)}', space=vmem, size = 0x10000, scoped, tag = 'scratch operand']
  #allocation3 [shape = 'f32[128,1]{1,0:T(8,128)}', space=vmem, size = 0x10000, scoped, tag = 'scratch operand']
  %s0 = inlined_call_operand.vmem [shape: f32[128,4], index: 0, kind: input, shape index: {}]
  %s1 = inlined_call_operand.vmem [shape: f32[128,1], index: 1, kind: input, shape index: {}]
  %s2 = inlined_call_operand.vmem [shape: f32[128,1], index: 2, kind: input, shape index: {}]
  %s3 = inlined_call_operand.hbm [shape: f32[1,8,128], index: 3, kind: output, shape index: {}]
  %s4 = sld [smem:[#allocation0]]
  $region30: #{tpu_custom_call.1} parent=0
    _
  %s6 = ssub.s32 1, %s4
  %s7 = scalar_select 0, %s6, %s4
  $region1: #{tpu_custom_call.1} parent=0
    #allocation4 [shape = 'u8[4096]{0}', space=vmem, size = 0x1000, scoped, tag = 'output window, operand 0, single buffered']
    #allocation5 [shape = 's32[1]{0}', space=sflag, size = 0x4, scoped, tag = 'scoped memory for tpu_custom_call.1']
    %8 = vsyncpa [#allocation5], 0
    // Predicated region
    $region2: #{tpu_custom_call.1} parent=1 // pred_check
      _
    $region3: #{tpu_custom_call.1} parent=1 // pred_check_branch
      %10 = sbr.rel (0) target = $region5
    $region4: #{tpu_custom_call.1} parent=1 // pred_region
      _
    $region5: #{tpu_custom_call.1} parent=1 // pred_fallthru
      _
    // Predicated region
    $region6: #{tpu_custom_call.1} parent=1 // pred_check
      _
    $region7: #{tpu_custom_call.1} parent=1 // pred_check_branch
      %12 = sbr.rel (0) target = $region9
    $region8: #{tpu_custom_call.1} parent=1 // pred_region
      _
    $region9: #{tpu_custom_call.1} parent=1 // pred_fallthru
      _
    // Predicated region
    $region10: #{tpu_custom_call.1} parent=1 // pred_check
      _
    $region11: #{tpu_custom_call.1} parent=1 // pred_check_branch
      %14 = sbr.rel (0) target = $region13
    $region12: #{tpu_custom_call.1} parent=1 // pred_region
      _
    $region13: #{tpu_custom_call.1} parent=1 // pred_fallthru
      _
    %p15 = scmp.eq.s32.totalorder 0, 0
    // Predicated region
    $region14: #{tpu_custom_call.1} parent=1 // pred_check
      %p16 = pneg %p15
    $region15: #{tpu_custom_call.1} parent=1 // pred_check_branch
      %18 = sbr.rel (%p16) target = $region17
    $region16: #{tpu_custom_call.1} parent=1 // pred_region
      %vm19 = vcmask 7168
      %20 = vst.msk [vmem:[#allocation2] sm:$0xff] %vm19, -inf
      %21 = vst.msk [vmem:[#allocation2 + $0x8] sm:$0xff] %vm19, -inf
      %22 = vst.msk [vmem:[#allocation2 + $0x10] sm:$0xff] %vm19, -inf
      %23 = vst.msk [vmem:[#allocation2 + $0x18] sm:$0xff] %vm19, -inf
      %24 = vst.msk [vmem:[#allocation2 + $0x20] sm:$0xff] %vm19, -inf
      %25 = vst.msk [vmem:[#allocation2 + $0x28] sm:$0xff] %vm19, -inf
      %26 = vst.msk [vmem:[#allocation2 + $0x30] sm:$0xff] %vm19, -inf
      %27 = vst.msk [vmem:[#allocation2 + $0x38] sm:$0xff] %vm19, -inf
      %28 = vst.msk [vmem:[#allocation2 + $0x40] sm:$0xff] %vm19, -inf
      %29 = vst.msk [vmem:[#allocation2 + $0x48] sm:$0xff] %vm19, -inf
      %30 = vst.msk [vmem:[#allocation2 + $0x50] sm:$0xff] %vm19, -inf
      %31 = vst.msk [vmem:[#allocation2 + $0x58] sm:$0xff] %vm19, -inf
      %32 = vst.msk [vmem:[#allocation2 + $0x60] sm:$0xff] %vm19, -inf
      %33 = vst.msk [vmem:[#allocation2 + $0x68] sm:$0xff] %vm19, -inf
      %34 = vst.msk [vmem:[#allocation2 + $0x70] sm:$0xff] %vm19, -inf
      %35 = vst.msk [vmem:[#allocation2 + $0x78] sm:$0xff] %vm19, -inf
      %36 = vst.msk [vmem:[#allocation3] sm:$0xff] %vm19, 0.0
      %37 = vst.msk [vmem:[#allocation3 + $0x8] sm:$0xff] %vm19, 0.0
      %38 = vst.msk [vmem:[#allocation3 + $0x10] sm:$0xff] %vm19, 0.0
      %39 = vst.msk [vmem:[#allocation3 + $0x18] sm:$0xff] %vm19, 0.0
      %40 = vst.msk [vmem:[#allocation3 + $0x20] sm:$0xff] %vm19, 0.0
      %41 = vst.msk [vmem:[#allocation3 + $0x28] sm:$0xff] %vm19, 0.0
      %42 = vst.msk [vmem:[#allocation3 + $0x30] sm:$0xff] %vm19, 0.0
      %43 = vst.msk [vmem:[#allocation3 + $0x38] sm:$0xff] %vm19, 0.0
      %44 = vst.msk [vmem:[#allocation3 + $0x40] sm:$0xff] %vm19, 0.0
      %45 = vst.msk [vmem:[#allocation3 + $0x48] sm:$0xff] %vm19, 0.0
      %46 = vst.msk [vmem:[#allocation3 + $0x50] sm:$0xff] %vm19, 0.0
      %47 = vst.msk [vmem:[#allocation3 + $0x58] sm:$0xff] %vm19, 0.0
      %48 = vst.msk [vmem:[#allocation3 + $0x60] sm:$0xff] %vm19, 0.0
      %49 = vst.msk [vmem:[#allocation3 + $0x68] sm:$0xff] %vm19, 0.0
      %50 = vst.msk [vmem:[#allocation3 + $0x70] sm:$0xff] %vm19, 0.0
      %51 = vst.msk [vmem:[#allocation3 + $0x78] sm:$0xff] %vm19, 0.0
    $region17: #{tpu_custom_call.1} parent=1 // pred_fallthru
      _
    %v52 = vld [vmem:[%s0] sm:$0xff]
    %v53 = vld [vmem:[%s0 + $0x8] sm:$0xff]
    %v54 = vld [vmem:[%s0 + $0x10] sm:$0xff]
    %v55 = vld [vmem:[%s0 + $0x18] sm:$0xff]
    %v56 = vld [vmem:[%s0 + $0x20] sm:$0xff]
    %v57 = vld [vmem:[%s0 + $0x28] sm:$0xff]
    %v58 = vld [vmem:[%s0 + $0x30] sm:$0xff]
    %v59 = vld [vmem:[%s0 + $0x38] sm:$0xff]
    %v60 = vld [vmem:[%s0 + $0x40] sm:$0xff]
    %v61 = vld [vmem:[%s0 + $0x48] sm:$0xff]
    %v62 = vld [vmem:[%s0 + $0x50] sm:$0xff]
    %v63 = vld [vmem:[%s0 + $0x58] sm:$0xff]
    %v64 = vld [vmem:[%s0 + $0x60] sm:$0xff]
    %v65 = vld [vmem:[%s0 + $0x68] sm:$0xff]
    %v66 = vld [vmem:[%s0 + $0x70] sm:$0xff]
    %v67 = vld [vmem:[%s0 + $0x78] sm:$0xff]
    %v68 = vld [vmem:[#allocation2] sm:$0xff]
    %v69 = vld [vmem:[#allocation2 + $0x8] sm:$0xff]
    %v70 = vld [vmem:[#allocation2 + $0x10] sm:$0xff]
    %v71 = vld [vmem:[#allocation2 + $0x18] sm:$0xff]
    %v72 = vld [vmem:[#allocation2 + $0x20] sm:$0xff]
    %v73 = vld [vmem:[#allocation2 + $0x28] sm:$0xff]
    %v74 = vld [vmem:[#allocation2 + $0x30] sm:$0xff]
    %v75 = vld [vmem:[#allocation2 + $0x38] sm:$0xff]
    %v76 = vld [vmem:[#allocation2 + $0x40] sm:$0xff]
    %v77 = vld [vmem:[#allocation2 + $0x48] sm:$0xff]
    %v78 = vld [vmem:[#allocation2 + $0x50] sm:$0xff]
    %v79 = vld [vmem:[#allocation2 + $0x58] sm:$0xff]
    %v80 = vld [vmem:[#allocation2 + $0x60] sm:$0xff]
    %v81 = vld [vmem:[#allocation2 + $0x68] sm:$0xff]
    %v82 = vld [vmem:[#allocation2 + $0x70] sm:$0xff]
    %v83 = vld [vmem:[#allocation2 + $0x78] sm:$0xff]
    %vm84 = vcmask 31744
    %v85 = vsel %vm84, %v52, -inf
    %86 = vmax.xlane.f32.xlu0 %v85
    %v87 = vpop.xlane.xlu0 %86
    %v88 = vsel %vm84, %v53, -inf
    %89 = vmax.xlane.f32.xlu0 %v88
    %v90 = vpop.xlane.xlu0 %89
    %v91 = vsel %vm84, %v54, -inf
    %92 = vmax.xlane.f32.xlu0 %v91
    %v93 = vpop.xlane.xlu0 %92
    %v94 = vsel %vm84, %v55, -inf
    %95 = vmax.xlane.f32.xlu0 %v94
    %v96 = vpop.xlane.xlu0 %95
    %v97 = vsel %vm84, %v56, -inf
    %98 = vmax.xlane.f32.xlu0 %v97
    %v99 = vpop.xlane.xlu0 %98
    %v100 = vsel %vm84, %v57, -inf
    %101 = vmax.xlane.f32.xlu0 %v100
    %v102 = vpop.xlane.xlu0 %101
    %v103 = vsel %vm84, %v58, -inf
    %104 = vmax.xlane.f32.xlu0 %v103
    %v105 = vpop.xlane.xlu0 %104
    %v106 = vsel %vm84, %v59, -inf
    %107 = vmax.xlane.f32.xlu0 %v106
    %v108 = vpop.xlane.xlu0 %107
    %v109 = vsel %vm84, %v60, -inf
    %110 = vmax.xlane.f32.xlu0 %v109
    %v111 = vpop.xlane.xlu0 %110
    %v112 = vsel %vm84, %v61, -inf
    %113 = vmax.xlane.f32.xlu0 %v112
    %v114 = vpop.xlane.xlu0 %113
    %v115 = vsel %vm84, %v62, -inf
    %116 = vmax.xlane.f32.xlu0 %v115
    %v117 = vpop.xlane.xlu0 %116
    %v118 = vsel %vm84, %v63, -inf
    %119 = vmax.xlane.f32.xlu0 %v118
    %v120 = vpop.xlane.xlu0 %119
    %v121 = vsel %vm84, %v64, -inf
    %122 = vmax.xlane.f32.xlu0 %v121
    %v123 = vpop.xlane.xlu0 %122
    %v124 = vsel %vm84, %v65, -inf
    %125 = vmax.xlane.f32.xlu0 %v124
    %v126 = vpop.xlane.xlu0 %125
    %v127 = vsel %vm84, %v66, -inf
    %128 = vmax.xlane.f32.xlu0 %v127
    %v129 = vpop.xlane.xlu0 %128
    %v130 = vsel %vm84, %v67, -inf
    %131 = vmax.xlane.f32.xlu0 %v130
    %v132 = vpop.xlane.xlu0 %131
    %v133 = vmax.f32 %v68, %v87
    %v134 = vmax.f32 %v69, %v90
    %v135 = vmax.f32 %v70, %v93
    %v136 = vmax.f32 %v71, %v96
    %v137 = vmax.f32 %v72, %v99
    %v138 = vmax.f32 %v73, %v102
    %v139 = vmax.f32 %v74, %v105
    %v140 = vmax.f32 %v75, %v108
    %v141 = vmax.f32 %v76, %v111
    %v142 = vmax.f32 %v77, %v114
    %v143 = vmax.f32 %v78, %v117
    %v144 = vmax.f32 %v79, %v120
    %v145 = vmax.f32 %v80, %v123
    %v146 = vmax.f32 %v81, %v126
    %v147 = vmax.f32 %v82, %v129
    %v148 = vmax.f32 %v83, %v132
    %v149 = vld [vmem:[#allocation3] sm:$0xff]
    %v150 = vld [vmem:[#allocation3 + $0x8] sm:$0xff]
    %v151 = vld [vmem:[#allocation3 + $0x10] sm:$0xff]
    %v152 = vld [vmem:[#allocation3 + $0x18] sm:$0xff]
    %v153 = vld [vmem:[#allocation3 + $0x20] sm:$0xff]
    %v154 = vld [vmem:[#allocation3 + $0x28] sm:$0xff]
    %v155 = vld [vmem:[#allocation3 + $0x30] sm:$0xff]
    %v156 = vld [vmem:[#allocation3 + $0x38] sm:$0xff]
    %v157 = vld [vmem:[#allocation3 + $0x40] sm:$0xff]
    %v158 = vld [vmem:[#allocation3 + $0x48] sm:$0xff]
    %v159 = vld [vmem:[#allocation3 + $0x50] sm:$0xff]
    %v160 = vld [vmem:[#allocation3 + $0x58] sm:$0xff]
    %v161 = vld [vmem:[#allocation3 + $0x60] sm:$0xff]
    %v162 = vld [vmem:[#allocation3 + $0x68] sm:$0xff]
    %v163 = vld [vmem:[#allocation3 + $0x70] sm:$0xff]
    %v164 = vld [vmem:[#allocation3 + $0x78] sm:$0xff]
    %v165 = vsub.f32 %v68, %v133
    %v166 = vsub.f32 %v69, %v134
    %v167 = vsub.f32 %v70, %v135
    %v168 = vsub.f32 %v71, %v136
    %v169 = vsub.f32 %v72, %v137
    %v170 = vsub.f32 %v73, %v138
    %v171 = vsub.f32 %v74, %v139
    %v172 = vsub.f32 %v75, %v140
    %v173 = vsub.f32 %v76, %v141
    %v174 = vsub.f32 %v77, %v142
    %v175 = vsub.f32 %v78, %v143
    %v176 = vsub.f32 %v79, %v144
    %v177 = vsub.f32 %v80, %v145
    %v178 = vsub.f32 %v81, %v146
    %v179 = vsub.f32 %v82, %v147
    %v180 = vsub.f32 %v83, %v148
    %v181 = vmul.f32 %v165, 1.442695
    %v182 = vpow.pop %v181
    %v183 = vmul.f32 %v166, 1.442695
    %v184 = vpow.pop %v183
    %v185 = vmul.f32 %v167, 1.442695
    %v186 = vpow.pop %v185
    %v187 = vmul.f32 %v168, 1.442695
    %v188 = vpow.pop %v187
    %v189 = vmul.f32 %v169, 1.442695
    %v190 = vpow.pop %v189
    %v191 = vmul.f32 %v170, 1.442695
    %v192 = vpow.pop %v191
    %v193 = vmul.f32 %v171, 1.442695
    %v194 = vpow.pop %v193
    %v195 = vmul.f32 %v172, 1.442695
    %v196 = vpow.pop %v195
    %v197 = vmul.f32 %v173, 1.442695
    %v198 = vpow.pop %v197
    %v199 = vmul.f32 %v174, 1.442695
    %v200 = vpow.pop %v199
    %v201 = vmul.f32 %v175, 1.442695
    %v202 = vpow.pop %v201
    %v203 = vmul.f32 %v176, 1.442695
    %v204 = vpow.pop %v203
    %v205 = vmul.f32 %v177, 1.442695
    %v206 = vpow.pop %v205
    %v207 = vmul.f32 %v178, 1.442695
    %v208 = vpow.pop %v207
    %v209 = vmul.f32 %v179, 1.442695
    %v210 = vpow.pop %v209
    %v211 = vmul.f32 %v180, 1.442695
    %v212 = vpow.pop %v211
    %v213 = vmul.f32 %v149, %v182
    %v214 = vmul.f32 %v150, %v184
    %v215 = vmul.f32 %v151, %v186
    %v216 = vmul.f32 %v152, %v188
    %v217 = vmul.f32 %v153, %v190
    %v218 = vmul.f32 %v154, %v192
    %v219 = vmul.f32 %v155, %v194
    %v220 = vmul.f32 %v156, %v196
    %v221 = vmul.f32 %v157, %v198
    %v222 = vmul.f32 %v158, %v200
    %v223 = vmul.f32 %v159, %v202
    %v224 = vmul.f32 %v160, %v204
    %v225 = vmul.f32 %v161, %v206
    %v226 = vmul.f32 %v162, %v208
    %v227 = vmul.f32 %v163, %v210
    %v228 = vmul.f32 %v164, %v212
    %230 = vset.pattern.permute.xlu0 0
    %231 = vperm.xlu0 %230, %v133
    %v232 = vpop.permute.xlu0 %231
    %235 = vset.pattern.permute.xlu0 0
    %236 = vperm.xlu0 %235, %v134
    %v237 = vpop.permute.xlu0 %236
    %240 = vset.pattern.permute.xlu0 0
    %241 = vperm.xlu0 %240, %v135
    %v242 = vpop.permute.xlu0 %241
    %245 = vset.pattern.permute.xlu0 0
    %246 = vperm.xlu0 %245, %v136
    %v247 = vpop.permute.xlu0 %246
    %250 = vset.pattern.permute.xlu0 0
    %251 = vperm.xlu0 %250, %v137
    %v252 = vpop.permute.xlu0 %251
    %255 = vset.pattern.permute.xlu0 0
    %256 = vperm.xlu0 %255, %v138
    %v257 = vpop.permute.xlu0 %256
    %260 = vset.pattern.permute.xlu0 0
    %261 = vperm.xlu0 %260, %v139
    %v262 = vpop.permute.xlu0 %261
    %265 = vset.pattern.permute.xlu0 0
    %266 = vperm.xlu0 %265, %v140
    %v267 = vpop.permute.xlu0 %266
    %270 = vset.pattern.permute.xlu0 0
    %271 = vperm.xlu0 %270, %v141
    %v272 = vpop.permute.xlu0 %271
    %275 = vset.pattern.permute.xlu0 0
    %276 = vperm.xlu0 %275, %v142
    %v277 = vpop.permute.xlu0 %276
    %280 = vset.pattern.permute.xlu0 0
    %281 = vperm.xlu0 %280, %v143
    %v282 = vpop.permute.xlu0 %281
    %285 = vset.pattern.permute.xlu0 0
    %286 = vperm.xlu0 %285, %v144
    %v287 = vpop.permute.xlu0 %286
    %290 = vset.pattern.permute.xlu0 0
    %291 = vperm.xlu0 %290, %v145
    %v292 = vpop.permute.xlu0 %291
    %295 = vset.pattern.permute.xlu0 0
    %296 = vperm.xlu0 %295, %v146
    %v297 = vpop.permute.xlu0 %296
    %300 = vset.pattern.permute.xlu0 0
    %301 = vperm.xlu0 %300, %v147
    %v302 = vpop.permute.xlu0 %301
    %305 = vset.pattern.permute.xlu0 0
    %306 = vperm.xlu0 %305, %v148
    %v307 = vpop.permute.xlu0 %306
    %v309 = vsub.f32 %v52, %v232
    %v310 = vsub.f32 %v53, %v237
    %v311 = vsub.f32 %v54, %v242
    %v312 = vsub.f32 %v55, %v247
    %v313 = vsub.f32 %v56, %v252
    %v314 = vsub.f32 %v57, %v257
    %v315 = vsub.f32 %v58, %v262
    %v316 = vsub.f32 %v59, %v267
    %v317 = vsub.f32 %v60, %v272
    %v318 = vsub.f32 %v61, %v277
    %v319 = vsub.f32 %v62, %v282
    %v320 = vsub.f32 %v63, %v287
    %v321 = vsub.f32 %v64, %v292
    %v322 = vsub.f32 %v65, %v297
    %v323 = vsub.f32 %v66, %v302
    %v324 = vsub.f32 %v67, %v307
    %v325 = vmul.f32 %v309, 1.442695
    %v326 = vpow.pop %v325
    %v327 = vmul.f32 %v310, 1.442695
    %v328 = vpow.pop %v327
    %v329 = vmul.f32 %v311, 1.442695
    %v330 = vpow.pop %v329
    %v331 = vmul.f32 %v312, 1.442695
    %v332 = vpow.pop %v331
    %v333 = vmul.f32 %v313, 1.442695
    %v334 = vpow.pop %v333
    %v335 = vmul.f32 %v314, 1.442695
    %v336 = vpow.pop %v335
    %v337 = vmul.f32 %v315, 1.442695
    %v338 = vpow.pop %v337
    %v339 = vmul.f32 %v316, 1.442695
    %v340 = vpow.pop %v339
    %v341 = vmul.f32 %v317, 1.442695
    %v342 = vpow.pop %v341
    %v343 = vmul.f32 %v318, 1.442695
    %v344 = vpow.pop %v343
    %v345 = vmul.f32 %v319, 1.442695
    %v346 = vpow.pop %v345
    %v347 = vmul.f32 %v320, 1.442695
    %v348 = vpow.pop %v347
    %v349 = vmul.f32 %v321, 1.442695
    %v350 = vpow.pop %v349
    %v351 = vmul.f32 %v322, 1.442695
    %v352 = vpow.pop %v351
    %v353 = vmul.f32 %v323, 1.442695
    %v354 = vpow.pop %v353
    %v355 = vmul.f32 %v324, 1.442695
    %v356 = vpow.pop %v355
    %v357 = vsel %vm84, %v326, 0.0
    %358 = vadd.xlane.f32.xlu0 %v357
    %v359 = vpop.xlane.xlu0 %358
    %v360 = vsel %vm84, %v328, 0.0
    %361 = vadd.xlane.f32.xlu0 %v360
    %v362 = vpop.xlane.xlu0 %361
    %v363 = vsel %vm84, %v330, 0.0
    %364 = vadd.xlane.f32.xlu0 %v363
    %v365 = vpop.xlane.xlu0 %364
    %v366 = vsel %vm84, %v332, 0.0
    %367 = vadd.xlane.f32.xlu0 %v366
    %v368 = vpop.xlane.xlu0 %367
    %v369 = vsel %vm84, %v334, 0.0
    %370 = vadd.xlane.f32.xlu0 %v369
    %v371 = vpop.xlane.xlu0 %370
    %v372 = vsel %vm84, %v336, 0.0
    %373 = vadd.xlane.f32.xlu0 %v372
    %v374 = vpop.xlane.xlu0 %373
    %v375 = vsel %vm84, %v338, 0.0
    %376 = vadd.xlane.f32.xlu0 %v375
    %v377 = vpop.xlane.xlu0 %376
    %v378 = vsel %vm84, %v340, 0.0
    %379 = vadd.xlane.f32.xlu0 %v378
    %v380 = vpop.xlane.xlu0 %379
    %v381 = vsel %vm84, %v342, 0.0
    %382 = vadd.xlane.f32.xlu0 %v381
    %v383 = vpop.xlane.xlu0 %382
    %v384 = vsel %vm84, %v344, 0.0
    %385 = vadd.xlane.f32.xlu0 %v384
    %v386 = vpop.xlane.xlu0 %385
    %v387 = vsel %vm84, %v346, 0.0
    %388 = vadd.xlane.f32.xlu0 %v387
    %v389 = vpop.xlane.xlu0 %388
    %v390 = vsel %vm84, %v348, 0.0
    %391 = vadd.xlane.f32.xlu0 %v390
    %v392 = vpop.xlane.xlu0 %391
    %v393 = vsel %vm84, %v350, 0.0
    %394 = vadd.xlane.f32.xlu0 %v393
    %v395 = vpop.xlane.xlu0 %394
    %v396 = vsel %vm84, %v352, 0.0
    %397 = vadd.xlane.f32.xlu0 %v396
    %v398 = vpop.xlane.xlu0 %397
    %v399 = vsel %vm84, %v354, 0.0
    %400 = vadd.xlane.f32.xlu0 %v399
    %v401 = vpop.xlane.xlu0 %400
    %v402 = vsel %vm84, %v356, 0.0
    %403 = vadd.xlane.f32.xlu0 %v402
    %v404 = vpop.xlane.xlu0 %403
    %v405 = vadd.f32 %v213, %v359
    %v406 = vadd.f32 %v214, %v362
    %v407 = vadd.f32 %v215, %v365
    %v408 = vadd.f32 %v216, %v368
    %v409 = vadd.f32 %v217, %v371
    %v410 = vadd.f32 %v218, %v374
    %v411 = vadd.f32 %v219, %v377
    %v412 = vadd.f32 %v220, %v380
    %v413 = vadd.f32 %v221, %v383
    %v414 = vadd.f32 %v222, %v386
    %v415 = vadd.f32 %v223, %v389
    %v416 = vadd.f32 %v224, %v392
    %v417 = vadd.f32 %v225, %v395
    %v418 = vadd.f32 %v226, %v398
    %v419 = vadd.f32 %v227, %v401
    %v420 = vadd.f32 %v228, %v404
    %vm421 = vcmask 7168
    %422 = vst.msk [vmem:[#allocation3] sm:$0xff] %vm421, %v405
    %423 = vst.msk [vmem:[#allocation3 + $0x8] sm:$0xff] %vm421, %v406
    %424 = vst.msk [vmem:[#allocation3 + $0x10] sm:$0xff] %vm421, %v407
    %425 = vst.msk [vmem:[#allocation3 + $0x18] sm:$0xff] %vm421, %v408
    %426 = vst.msk [vmem:[#allocation3 + $0x20] sm:$0xff] %vm421, %v409
    %427 = vst.msk [vmem:[#allocation3 + $0x28] sm:$0xff] %vm421, %v410
    %428 = vst.msk [vmem:[#allocation3 + $0x30] sm:$0xff] %vm421, %v411
    %429 = vst.msk [vmem:[#allocation3 + $0x38] sm:$0xff] %vm421, %v412
    %430 = vst.msk [vmem:[#allocation3 + $0x40] sm:$0xff] %vm421, %v413
    %431 = vst.msk [vmem:[#allocation3 + $0x48] sm:$0xff] %vm421, %v414
    %432 = vst.msk [vmem:[#allocation3 + $0x50] sm:$0xff] %vm421, %v415
    %433 = vst.msk [vmem:[#allocation3 + $0x58] sm:$0xff] %vm421, %v416
    %434 = vst.msk [vmem:[#allocation3 + $0x60] sm:$0xff] %vm421, %v417
    %435 = vst.msk [vmem:[#allocation3 + $0x68] sm:$0xff] %vm421, %v418
    %436 = vst.msk [vmem:[#allocation3 + $0x70] sm:$0xff] %vm421, %v419
    %437 = vst.msk [vmem:[#allocation3 + $0x78] sm:$0xff] %vm421, %v420
    %438 = vst.msk [vmem:[#allocation2] sm:$0xff] %vm421, %v133
    %439 = vst.msk [vmem:[#allocation2 + $0x8] sm:$0xff] %vm421, %v134
    %440 = vst.msk [vmem:[#allocation2 + $0x10] sm:$0xff] %vm421, %v135
    %441 = vst.msk [vmem:[#allocation2 + $0x18] sm:$0xff] %vm421, %v136
    %442 = vst.msk [vmem:[#allocation2 + $0x20] sm:$0xff] %vm421, %v137
    %443 = vst.msk [vmem:[#allocation2 + $0x28] sm:$0xff] %vm421, %v138
    %444 = vst.msk [vmem:[#allocation2 + $0x30] sm:$0xff] %vm421, %v139
    %445 = vst.msk [vmem:[#allocation2 + $0x38] sm:$0xff] %vm421, %v140
    %446 = vst.msk [vmem:[#allocation2 + $0x40] sm:$0xff] %vm421, %v141
    %447 = vst.msk [vmem:[#allocation2 + $0x48] sm:$0xff] %vm421, %v142
    %448 = vst.msk [vmem:[#allocation2 + $0x50] sm:$0xff] %vm421, %v143
    %449 = vst.msk [vmem:[#allocation2 + $0x58] sm:$0xff] %vm421, %v144
    %450 = vst.msk [vmem:[#allocation2 + $0x60] sm:$0xff] %vm421, %v145
    %451 = vst.msk [vmem:[#allocation2 + $0x68] sm:$0xff] %vm421, %v146
    %452 = vst.msk [vmem:[#allocation2 + $0x70] sm:$0xff] %vm421, %v147
    %453 = vst.msk [vmem:[#allocation2 + $0x78] sm:$0xff] %vm421, %v148
    // Predicated region
    $region18: #{tpu_custom_call.1} parent=1 // pred_check
      %p454 = pneg %p15
    $region19: #{tpu_custom_call.1} parent=1 // pred_check_branch
      %456 = sbr.rel (%p454) target = $region21
    $region20: #{tpu_custom_call.1} parent=1 // pred_region
      %v457 = vld [vmem:[%s1] sm:$0xff]
      %v458 = vld [vmem:[%s1 + $0x8] sm:$0xff]
      %v459 = vld [vmem:[%s1 + $0x10] sm:$0xff]
      %v460 = vld [vmem:[%s1 + $0x18] sm:$0xff]
      %v461 = vld [vmem:[%s1 + $0x20] sm:$0xff]
      %v462 = vld [vmem:[%s1 + $0x28] sm:$0xff]
      %v463 = vld [vmem:[%s1 + $0x30] sm:$0xff]
      %v464 = vld [vmem:[%s1 + $0x38] sm:$0xff]
      %v465 = vld [vmem:[%s1 + $0x40] sm:$0xff]
      %v466 = vld [vmem:[%s1 + $0x48] sm:$0xff]
      %v467 = vld [vmem:[%s1 + $0x50] sm:$0xff]
      %v468 = vld [vmem:[%s1 + $0x58] sm:$0xff]
      %v469 = vld [vmem:[%s1 + $0x60] sm:$0xff]
      %v470 = vld [vmem:[%s1 + $0x68] sm:$0xff]
      %v471 = vld [vmem:[%s1 + $0x70] sm:$0xff]
      %v472 = vld [vmem:[%s1 + $0x78] sm:$0xff]
      %v473 = vld [vmem:[%s2] sm:$0xff]
      %v474 = vld [vmem:[%s2 + $0x8] sm:$0xff]
      %v475 = vld [vmem:[%s2 + $0x10] sm:$0xff]
      %v476 = vld [vmem:[%s2 + $0x18] sm:$0xff]
      %v477 = vld [vmem:[%s2 + $0x20] sm:$0xff]
      %v478 = vld [vmem:[%s2 + $0x28] sm:$0xff]
      %v479 = vld [vmem:[%s2 + $0x30] sm:$0xff]
      %v480 = vld [vmem:[%s2 + $0x38] sm:$0xff]
      %v481 = vld [vmem:[%s2 + $0x40] sm:$0xff]
      %v482 = vld [vmem:[%s2 + $0x48] sm:$0xff]
      %v483 = vld [vmem:[%s2 + $0x50] sm:$0xff]
      %v484 = vld [vmem:[%s2 + $0x58] sm:$0xff]
      %v485 = vld [vmem:[%s2 + $0x60] sm:$0xff]
      %v486 = vld [vmem:[%s2 + $0x68] sm:$0xff]
      %v487 = vld [vmem:[%s2 + $0x70] sm:$0xff]
      %v488 = vld [vmem:[%s2 + $0x78] sm:$0xff]
      %v489 = vld [vmem:[#allocation2] sm:$0xff]
      %v490 = vld [vmem:[#allocation2 + $0x8] sm:$0xff]
      %v491 = vld [vmem:[#allocation2 + $0x10] sm:$0xff]
      %v492 = vld [vmem:[#allocation2 + $0x18] sm:$0xff]
      %v493 = vld [vmem:[#allocation2 + $0x20] sm:$0xff]
      %v494 = vld [vmem:[#allocation2 + $0x28] sm:$0xff]
      %v495 = vld [vmem:[#allocation2 + $0x30] sm:$0xff]
      %v496 = vld [vmem:[#allocation2 + $0x38] sm:$0xff]
      %v497 = vld [vmem:[#allocation2 + $0x40] sm:$0xff]
      %v498 = vld [vmem:[#allocation2 + $0x48] sm:$0xff]
      %v499 = vld [vmem:[#allocation2 + $0x50] sm:$0xff]
      %v500 = vld [vmem:[#allocation2 + $0x58] sm:$0xff]
      %v501 = vld [vmem:[#allocation2 + $0x60] sm:$0xff]
      %v502 = vld [vmem:[#allocation2 + $0x68] sm:$0xff]
      %v503 = vld [vmem:[#allocation2 + $0x70] sm:$0xff]
      %v504 = vld [vmem:[#allocation2 + $0x78] sm:$0xff]
      %v505 = vld [vmem:[#allocation3] sm:$0xff]
      %v506 = vld [vmem:[#allocation3 + $0x8] sm:$0xff]
      %v507 = vld [vmem:[#allocation3 + $0x10] sm:$0xff]
      %v508 = vld [vmem:[#allocation3 + $0x18] sm:$0xff]
      %v509 = vld [vmem:[#allocation3 + $0x20] sm:$0xff]
      %v510 = vld [vmem:[#allocation3 + $0x28] sm:$0xff]
      %v511 = vld [vmem:[#allocation3 + $0x30] sm:$0xff]
      %v512 = vld [vmem:[#allocation3 + $0x38] sm:$0xff]
      %v513 = vld [vmem:[#allocation3 + $0x40] sm:$0xff]
      %v514 = vld [vmem:[#allocation3 + $0x48] sm:$0xff]
      %v515 = vld [vmem:[#allocation3 + $0x50] sm:$0xff]
      %v516 = vld [vmem:[#allocation3 + $0x58] sm:$0xff]
      %v517 = vld [vmem:[#allocation3 + $0x60] sm:$0xff]
      %v518 = vld [vmem:[#allocation3 + $0x68] sm:$0xff]
      %v519 = vld [vmem:[#allocation3 + $0x70] sm:$0xff]
      %v520 = vld [vmem:[#allocation3 + $0x78] sm:$0xff]
      %v521 = vsub.f32 %v457, %v489
      %v522 = vsub.f32 %v458, %v490
      %v523 = vsub.f32 %v459, %v491
      %v524 = vsub.f32 %v460, %v492
      %v525 = vsub.f32 %v461, %v493
      %v526 = vsub.f32 %v462, %v494
      %v527 = vsub.f32 %v463, %v495
      %v528 = vsub.f32 %v464, %v496
      %v529 = vsub.f32 %v465, %v497
      %v530 = vsub.f32 %v466, %v498
      %v531 = vsub.f32 %v467, %v499
      %v532 = vsub.f32 %v468, %v500
      %v533 = vsub.f32 %v469, %v501
      %v534 = vsub.f32 %v470, %v502
      %v535 = vsub.f32 %v471, %v503
      %v536 = vsub.f32 %v472, %v504
      %v537 = vlog2.pop %v505
      %v538 = vmul.f32 %v537, 0.6931472
      %v539 = vlog2.pop %v506
      %v540 = vmul.f32 %v539, 0.6931472
      %v541 = vlog2.pop %v507
      %v542 = vmul.f32 %v541, 0.6931472
      %v543 = vlog2.pop %v508
      %v544 = vmul.f32 %v543, 0.6931472
      %v545 = vlog2.pop %v509
      %v546 = vmul.f32 %v545, 0.6931472
      %v547 = vlog2.pop %v510
      %v548 = vmul.f32 %v547, 0.6931472
      %v549 = vlog2.pop %v511
      %v550 = vmul.f32 %v549, 0.6931472
      %v551 = vlog2.pop %v512
      %v552 = vmul.f32 %v551, 0.6931472
      %v553 = vlog2.pop %v513
      %v554 = vmul.f32 %v553, 0.6931472
      %v555 = vlog2.pop %v514
      %v556 = vmul.f32 %v555, 0.6931472
      %v557 = vlog2.pop %v515
      %v558 = vmul.f32 %v557, 0.6931472
      %v559 = vlog2.pop %v516
      %v560 = vmul.f32 %v559, 0.6931472
      %v561 = vlog2.pop %v517
      %v562 = vmul.f32 %v561, 0.6931472
      %v563 = vlog2.pop %v518
      %v564 = vmul.f32 %v563, 0.6931472
      %v565 = vlog2.pop %v519
      %v566 = vmul.f32 %v565, 0.6931472
      %v567 = vlog2.pop %v520
      %v568 = vmul.f32 %v567, 0.6931472
      %v569 = vsub.f32 %v521, %v538
      %v570 = vsub.f32 %v522, %v540
      %v571 = vsub.f32 %v523, %v542
      %v572 = vsub.f32 %v524, %v544
      %v573 = vsub.f32 %v525, %v546
      %v574 = vsub.f32 %v526, %v548
      %v575 = vsub.f32 %v527, %v550
      %v576 = vsub.f32 %v528, %v552
      %v577 = vsub.f32 %v529, %v554
      %v578 = vsub.f32 %v530, %v556
      %v579 = vsub.f32 %v531, %v558
      %v580 = vsub.f32 %v532, %v560
      %v581 = vsub.f32 %v533, %v562
      %v582 = vsub.f32 %v534, %v564
      %v583 = vsub.f32 %v535, %v566
      %v584 = vsub.f32 %v536, %v568
      %v585 = vmul.f32 %v521, 1.442695
      %v586 = vpow.pop %v585
      %v587 = vmul.f32 %v522, 1.442695
      %v588 = vpow.pop %v587
      %v589 = vmul.f32 %v523, 1.442695
      %v590 = vpow.pop %v589
      %v591 = vmul.f32 %v524, 1.442695
      %v592 = vpow.pop %v591
      %v593 = vmul.f32 %v525, 1.442695
      %v594 = vpow.pop %v593
      %v595 = vmul.f32 %v526, 1.442695
      %v596 = vpow.pop %v595
      %v597 = vmul.f32 %v527, 1.442695
      %v598 = vpow.pop %v597
      %v599 = vmul.f32 %v528, 1.442695
      %v600 = vpow.pop %v599
      %v601 = vmul.f32 %v529, 1.442695
      %v602 = vpow.pop %v601
      %v603 = vmul.f32 %v530, 1.442695
      %v604 = vpow.pop %v603
      %v605 = vmul.f32 %v531, 1.442695
      %v606 = vpow.pop %v605
      %v607 = vmul.f32 %v532, 1.442695
      %v608 = vpow.pop %v607
      %v609 = vmul.f32 %v533, 1.442695
      %v610 = vpow.pop %v609
      %v611 = vmul.f32 %v534, 1.442695
      %v612 = vpow.pop %v611
      %v613 = vmul.f32 %v535, 1.442695
      %v614 = vpow.pop %v613
      %v615 = vmul.f32 %v536, 1.442695
      %v616 = vpow.pop %v615
      %v617 = vsub.f32 %v505, %v586
      %v618 = vsub.f32 %v506, %v588
      %v619 = vsub.f32 %v507, %v590
      %v620 = vsub.f32 %v508, %v592
      %v621 = vsub.f32 %v509, %v594
      %v622 = vsub.f32 %v510, %v596
      %v623 = vsub.f32 %v511, %v598
      %v624 = vsub.f32 %v512, %v600
      %v625 = vsub.f32 %v513, %v602
      %v626 = vsub.f32 %v514, %v604
      %v627 = vsub.f32 %v515, %v606
      %v628 = vsub.f32 %v516, %v608
      %v629 = vsub.f32 %v517, %v610
      %v630 = vsub.f32 %v518, %v612
      %v631 = vsub.f32 %v519, %v614
      %v632 = vsub.f32 %v520, %v616
      %v633 = vrcp.pop %v505
      %v634 = vmul.f32 %v617, %v633
      %v635 = vrcp.pop %v506
      %v636 = vmul.f32 %v618, %v635
      %v637 = vrcp.pop %v507
      %v638 = vmul.f32 %v619, %v637
      %v639 = vrcp.pop %v508
      %v640 = vmul.f32 %v620, %v639
      %v641 = vrcp.pop %v509
      %v642 = vmul.f32 %v621, %v641
      %v643 = vrcp.pop %v510
      %v644 = vmul.f32 %v622, %v643
      %v645 = vrcp.pop %v511
      %v646 = vmul.f32 %v623, %v645
      %v647 = vrcp.pop %v512
      %v648 = vmul.f32 %v624, %v647
      %v649 = vrcp.pop %v513
      %v650 = vmul.f32 %v625, %v649
      %v651 = vrcp.pop %v514
      %v652 = vmul.f32 %v626, %v651
      %v653 = vrcp.pop %v515
      %v654 = vmul.f32 %v627, %v653
      %v655 = vrcp.pop %v516
      %v656 = vmul.f32 %v628, %v655
      %v657 = vrcp.pop %v517
      %v658 = vmul.f32 %v629, %v657
      %v659 = vrcp.pop %v518
      %v660 = vmul.f32 %v630, %v659
      %v661 = vrcp.pop %v519
      %v662 = vmul.f32 %v631, %v661
      %v663 = vrcp.pop %v520
      %v664 = vmul.f32 %v632, %v663
      %v665 = vmul.f32 %v634, %v634
      %v666 = vmul.f32 %v636, %v636
      %v667 = vmul.f32 %v638, %v638
      %v668 = vmul.f32 %v640, %v640
      %v669 = vmul.f32 %v642, %v642
      %v670 = vmul.f32 %v644, %v644
      %v671 = vmul.f32 %v646, %v646
      %v672 = vmul.f32 %v648, %v648
      %v673 = vmul.f32 %v650, %v650
      %v674 = vmul.f32 %v652, %v652
      %v675 = vmul.f32 %v654, %v654
      %v676 = vmul.f32 %v656, %v656
      %v677 = vmul.f32 %v658, %v658
      %v678 = vmul.f32 %v660, %v660
      %v679 = vmul.f32 %v662, %v662
      %v680 = vmul.f32 %v664, %v664
      %v681 = vsub.f32 0.0, %v473
      %v682 = vsub.f32 0.0, %v474
      %v683 = vsub.f32 0.0, %v475
      %v684 = vsub.f32 0.0, %v476
      %v685 = vsub.f32 0.0, %v477
      %v686 = vsub.f32 0.0, %v478
      %v687 = vsub.f32 0.0, %v479
      %v688 = vsub.f32 0.0, %v480
      %v689 = vsub.f32 0.0, %v481
      %v690 = vsub.f32 0.0, %v482
      %v691 = vsub.f32 0.0, %v483
      %v692 = vsub.f32 0.0, %v484
      %v693 = vsub.f32 0.0, %v485
      %v694 = vsub.f32 0.0, %v486
      %v695 = vsub.f32 0.0, %v487
      %v696 = vsub.f32 0.0, %v488
      %v697 = vmul.f32 %v681, %v665
      %v698 = vmul.f32 %v682, %v666
      %v699 = vmul.f32 %v683, %v667
      %v700 = vmul.f32 %v684, %v668
      %v701 = vmul.f32 %v685, %v669
      %v702 = vmul.f32 %v686, %v670
      %v703 = vmul.f32 %v687, %v671
      %v704 = vmul.f32 %v688, %v672
      %v705 = vmul.f32 %v689, %v673
      %v706 = vmul.f32 %v690, %v674
      %v707 = vmul.f32 %v691, %v675
      %v708 = vmul.f32 %v692, %v676
      %v709 = vmul.f32 %v693, %v677
      %v710 = vmul.f32 %v694, %v678
      %v711 = vmul.f32 %v695, %v679
      %v712 = vmul.f32 %v696, %v680
      %v713 = vmul.f32 %v697, %v569
      %v714 = vmul.f32 %v698, %v570
      %v715 = vmul.f32 %v699, %v571
      %v716 = vmul.f32 %v700, %v572
      %v717 = vmul.f32 %v701, %v573
      %v718 = vmul.f32 %v702, %v574
      %v719 = vmul.f32 %v703, %v575
      %v720 = vmul.f32 %v704, %v576
      %v721 = vmul.f32 %v705, %v577
      %v722 = vmul.f32 %v706, %v578
      %v723 = vmul.f32 %v707, %v579
      %v724 = vmul.f32 %v708, %v580
      %v725 = vmul.f32 %v709, %v581
      %v726 = vmul.f32 %v710, %v582
      %v727 = vmul.f32 %v711, %v583
      %v728 = vmul.f32 %v712, %v584
      %v729 = vsel %vm421, %v713, 0.0
      %v730 = vsel %vm421, %v714, 0.0
      %v731 = vadd.f32 %v729, %v730
      %v732 = vsel %vm421, %v715, 0.0
      %v733 = vadd.f32 %v731, %v732
      %v734 = vsel %vm421, %v716, 0.0
      %v735 = vadd.f32 %v733, %v734
      %v736 = vsel %vm421, %v717, 0.0
      %v737 = vadd.f32 %v735, %v736
      %v738 = vsel %vm421, %v718, 0.0
      %v739 = vadd.f32 %v737, %v738
      %v740 = vsel %vm421, %v719, 0.0
      %v741 = vadd.f32 %v739, %v740
      %v742 = vsel %vm421, %v720, 0.0
      %v743 = vadd.f32 %v741, %v742
      %v744 = vsel %vm421, %v721, 0.0
      %v745 = vadd.f32 %v743, %v744
      %v746 = vsel %vm421, %v722, 0.0
      %v747 = vadd.f32 %v745, %v746
      %v748 = vsel %vm421, %v723, 0.0
      %v749 = vadd.f32 %v747, %v748
      %v750 = vsel %vm421, %v724, 0.0
      %v751 = vadd.f32 %v749, %v750
      %v752 = vsel %vm421, %v725, 0.0
      %v753 = vadd.f32 %v751, %v752
      %v754 = vsel %vm421, %v726, 0.0
      %v755 = vadd.f32 %v753, %v754
      %v756 = vsel %vm421, %v727, 0.0
      %v757 = vadd.f32 %v755, %v756
      %v758 = vsel %vm421, %v728, 0.0
      %v759 = vadd.f32 %v757, %v758
      %760 = vadd.xlane.f32.xlu0 %v759
      %v761 = vpop.xlane.xlu0 %760
      %v762 = vrot.slane %v761, 4
      %v763 = vadd.f32 %v761, %v762
      %v764 = vrot.slane %v763, 2
      %v765 = vadd.f32 %v763, %v764
      %v766 = vrot.slane %v765, 1
      %v767 = vadd.f32 %v765, %v766
      %s768 = vtos %v767
      %v769 = vstv %s768
      %770 = vst [vmem:[#allocation4] sm:$0xff] %v769
    $region21: #{tpu_custom_call.1} parent=1 // pred_fallthru
      _
    // Predicated region
    $region22: #{tpu_custom_call.1} parent=1 // pred_check
      _
    $region23: #{tpu_custom_call.1} parent=1 // pred_check_branch
      %772 = sbr.rel (0) target = $region25
    $region24: #{tpu_custom_call.1} parent=1 // pred_region
      %s774 = ssub.s32 128, 128
      %775 = vsyncadd [#allocation5], %s774
      %s777 = sshll.u32 [#allocation4], 4
      %s778 = int_to_ptr.vmem [resolvable:$true] %s777
      %780 = dma.vmem_to_hbm [thread:$0]  %s778, 128, %s3, [#allocation5]
    $region25: #{tpu_custom_call.1} parent=1 // pred_fallthru
      _
    // Predicated region
    $region26: #{tpu_custom_call.1} parent=1 // pred_check
      _
    $region27: #{tpu_custom_call.1} parent=1 // pred_check_branch
      %782 = sbr.rel (0) target = $region29
    $region28: #{tpu_custom_call.1} parent=1 // pred_region
      %783 = dma.done [#allocation5], 128
    $region29: #{tpu_custom_call.1} parent=1 // pred_fallthru
      _
    %784 = vsyncpa [#allocation5], 1

</llo_original>
